<compile_context>
chip_gen: v5e
topology: v5e:2x2
jax: 0.10.0
libtpu: 0.0.40
codegen_flags: <defaults>
</compile_context>

<pallas_src>
import functools

import numpy as np
import jax
import jax.numpy as jnp
from jax.experimental import pallas as pl
from jax.experimental.pallas import tpu as pltpu

EPS = 1e-5


def basic_block_kernel(x_ref, w1_ref, g1_ref, b1_ref, w2_ref, g2_ref, b2_ref,
                       out_ref, pad_ref, *, C, W):
    """Fused BasicBlock forward.

    x_ref   : (N, H, W*C)    lane-packed input rows (lane = w*C + c), f32
    w1_ref  : (3*W*C, W*C)   block-Toeplitz conv1 weight (W-pad folded in), bf16
    w2_ref  : (3*W*C, W*C)   block-Toeplitz conv2 weight, bf16
    g*/b*   : (1, W*C)       BN gamma / beta pre-broadcast to the lane layout, f32
    out_ref : (N*H, W*C)     lane-dense output slab, f32
    pad_ref : (N, Hp, W*C)   8-aligned H-padded VMEM staging slab (reused by
                             both convs; only rows 0..H+1 are ever read)
    """
    N, H, L = x_ref.shape
    R = N * H
    inv_count = 1.0 / (R * W)

    def conv3x3(w_ref):
        # Three accumulating band matmuls against static 128-row slices of the
        # banded weight.  Bands are the H-shifted rows of the padded slab;
        # bf16 MXU inputs, f32 accumulation.  No (R, 3L) concat temporary.
        acc = None
        for k in range(3):
            band = pad_ref[:, k:k + H, :].reshape(R, L).astype(jnp.bfloat16)
            part = jnp.dot(band, w_ref[k * L:(k + 1) * L, :],
                           preferred_element_type=jnp.float32)
            acc = part if acc is None else acc + part
        return acc

    def bn(y, g_l, b_l):
        # Training-mode batch statistics (biased variance), all in f32.
        # Row reduction first (XLU sublane reduce), then a log2(W) roll(+add)
        # tree combines same-channel lanes (cyclic shift by multiples of C
        # keeps the channel fixed), so no pooling matmul / matrix is needed.
        stats = jnp.concatenate(
            [jnp.sum(y, axis=0, keepdims=True),
             jnp.sum(y * y, axis=0, keepdims=True)], axis=0)        # (2, L)
        shift = C
        for _ in range(W.bit_length() - 1):
            stats = stats + pltpu.roll(stats, shift=shift, axis=1)
            shift *= 2
        mean_l = stats[0:1, :] * inv_count
        msq_l = stats[1:2, :] * inv_count
        # TODO(synk): E[y^2]-E[y]^2 is cancellation-prone at production scale;
        # switch to a two-pass / compensated formulation when tiling.
        var_l = msq_l - mean_l * mean_l
        scale_l = g_l * jax.lax.rsqrt(var_l + EPS)
        shift_l = b_l - mean_l * scale_l
        return y * scale_l + shift_l

    # ---- stage x into the padded slab: zero borders written once, rows past
    # ---- H+1 of the 8-aligned slab are never read ---------------------------
    zrow = jnp.zeros((N, 1, L), jnp.float32)
    pad_ref[:, 0:1, :] = zrow
    pad_ref[:, H + 1:H + 2, :] = zrow
    x = x_ref[...]
    pad_ref[:, 1:1 + H, :] = x

    # ---- conv1 -> bn1 -> relu ------------------------------------------------
    h1 = jnp.maximum(bn(conv3x3(w1_ref), g1_ref[...], b1_ref[...]), 0.0)

    # ---- restage h1 into the same slab (borders already zero), conv2 -> bn2 --
    pad_ref[:, 1:1 + H, :] = h1.reshape(N, H, L)
    h2 = bn(conv3x3(w2_ref), g2_ref[...], b2_ref[...])

    # ---- residual add + ReLU; full-lane, fully aligned store -----------------
    out_ref[...] = jnp.maximum(h2 + x.reshape(R, L), 0.0)


def _banded_conv3x3_weight(w_oihw, width):
    """Torch OIHW 3x3 conv weight -> block-Toeplitz (3*W*Cin, W*Cout) matrix.

    Row index = ki*(W*Cin) + ws*Cin + ci  (H-tap, source column, in-channel)
    Col index = wo*Cout + co              (output column, out-channel)
    Missing (zero) blocks implement the W-direction zero padding, so the kernel
    never needs a W-padded activation buffer.

    TODO(synk): this matrix is only ~3/W dense and scales as (3*W*C)^2 — for
    production widths use per-tap (Cin, Cout) weights with a lane roll for the
    +-1 W shift, or per-W-tile banded slices.
    """
    w = np.asarray(w_oihw, dtype=np.float32)        # (Cout, Cin, 3, 3)
    cout, cin = int(w.shape[0]), int(w.shape[1])
    B = np.zeros((3 * width * cin, width * cout), np.float32)
    for ki in range(3):
        for kj in range(3):
            blk = w[:, :, ki, kj].T                 # (Cin, Cout)
            for wo in range(width):
                ws = wo + kj - 1                    # source column for this tap
                if 0 <= ws < width:
                    r0 = (ki * width + ws) * cin
                    B[r0:r0 + cin, wo * cout:(wo + 1) * cout] = blk
    return B


@jax.jit
def _basic_block_pallas(x_nchw, w1b, g1l, b1l, w2b, g2l, b2l):
    N, C, H, W = x_nchw.shape
    L = W * C
    Hp = ((H + 2) + 7) // 8 * 8   # 8-aligned padded height for the VMEM slab

    # NCHW -> lane-packed rows (N, H, W*C).  No HBM-side H padding: the kernel
    # stages the padded slab in VMEM itself.
    x_rows = jnp.transpose(x_nchw, (0, 2, 3, 1)).reshape(N, H, L)

    vmem = pl.BlockSpec(memory_space=pltpu.MemorySpace.VMEM)
    out2d = pl.pallas_call(
        functools.partial(basic_block_kernel, C=C, W=W),
        out_shape=jax.ShapeDtypeStruct((N * H, L), jnp.float32),
        in_specs=[vmem] * 7,
        out_specs=vmem,
        scratch_shapes=[pltpu.VMEM((N, Hp, L), jnp.float32)],
    )(x_rows, w1b, g1l, b1l, w2b, g2l, b2l)

    return jnp.transpose(out2d.reshape(N, H, W, C), (0, 3, 1, 2))  # back to NCHW


def basic_block(x_nchw, w1_oihw, g1, b1, w2_oihw, g2, b2):
    """BasicBlock forward: relu(bn2(conv2(relu(bn1(conv1(x))))) + x), stride=1."""
    N, C, H, W = x_nchw.shape
    # stride=1 and downsample=None => inplanes == planes (needed for residual add).
    assert w1_oihw.shape[:2] == (C, C) and w2_oihw.shape[:2] == (C, C)
    assert H % 8 == 0, "row-merge reshapes assume H is a multiple of 8"
    assert W & (W - 1) == 0, "BN roll-reduce tree assumes W is a power of two"
    # TODO(synk): non-power-of-two W needs a (2,L)x(L,L) pooling-dot fallback.

    # One-time parameter layout prep, hoisted out of the kernel: bf16
    # block-Toeplitz conv weights and lane-broadcast f32 BN affine parameters.
    w1b = jnp.asarray(_banded_conv3x3_weight(w1_oihw, W), jnp.bfloat16)
    w2b = jnp.asarray(_banded_conv3x3_weight(w2_oihw, W), jnp.bfloat16)
    g1l = jnp.tile(jnp.asarray(g1, jnp.float32).reshape(1, C), (1, W))
    b1l = jnp.tile(jnp.asarray(b1, jnp.float32).reshape(1, C), (1, W))
    g2l = jnp.tile(jnp.asarray(g2, jnp.float32).reshape(1, C), (1, W))
    b2l = jnp.tile(jnp.asarray(b2, jnp.float32).reshape(1, C), (1, W))

    return _basic_block_pallas(x_nchw, w1b, g1l, b1l, w2b, g2l, b2l)


def _reference(x, w1, g1, b1, w2, g2, b2):
    """Pure-JAX f32 reference matching the PyTorch forward (training-mode BN)."""
    dn = jax.lax.conv_dimension_numbers(x.shape, w1.shape,
                                        ("NCHW", "OIHW", "NCHW"))

    def conv(a, w):
        return jax.lax.conv_general_dilated(a, w, (1, 1), ((1, 1), (1, 1)),
                                            dimension_numbers=dn)

    def bn(o, g, b):
        mean = o.mean(axis=(0, 2, 3), keepdims=True)
        var = ((o - mean) ** 2).mean(axis=(0, 2, 3), keepdims=True)
        return ((o - mean) * jax.lax.rsqrt(var + EPS)
                * g.reshape(1, -1, 1, 1) + b.reshape(1, -1, 1, 1))

    o = jnp.maximum(bn(conv(x, w1), g1, b1), 0.0)
    o = bn(conv(o, w2), g2, b2)
    return jnp.maximum(o + x, 0.0)


if __name__ == "__main__":
    # Small shapes: batch=2, inplanes=planes=8, spatial=16x16, stride=1.
    # W * C = 128 packs one full 128-lane vector per image row.
    N, C, H, W = 2, 8, 16, 16
    key = jax.random.PRNGKey(0)
    k_x, k_w1, k_w2 = jax.random.split(key, 3)

    x = jax.random.normal(k_x, (N, C, H, W), dtype=jnp.float32)
    fan_in = C * 3 * 3
    w1 = jax.random.normal(k_w1, (C, C, 3, 3), jnp.float32) * (2.0 / fan_in) ** 0.5
    w2 = jax.random.normal(k_w2, (C, C, 3, 3), jnp.float32) * (2.0 / fan_in) ** 0.5
    # BatchNorm default init: gamma=1, beta=0.
    g1 = jnp.ones((C,), jnp.float32)
    b1 = jnp.zeros((C,), jnp.float32)
    g2 = jnp.ones((C,), jnp.float32)
    b2 = jnp.zeros((C,), jnp.float32)

    out = jax.block_until_ready(basic_block(x, w1, g1, b1, w2, g2, b2))
    ref = jax.block_until_ready(_reference(x, w1, g1, b1, w2, g2, b2))
    # Tolerance reflects bf16 MXU inputs (f32 accumulation, f32 BN stats)
    # across two stacked convs vs. the pure-f32 reference; a semantic bug
    # (wrong tap / wrong stats) would miss by orders of magnitude more.
    np.testing.assert_allclose(np.asarray(out), np.asarray(ref),
                               rtol=5e-2, atol=5e-2)
    print("KERNEL_OK")
</pallas_src>

<mosaic_0001>
module attributes {stable_mosaic.version = 11 : i64} {
  func.func @basic_block_kernel(%arg0: memref<2x16x128xf32, #tpu.memory_space<vmem>>, %arg1: memref<384x128xbf16, #tpu.memory_space<vmem>>, %arg2: memref<1x128xf32, #tpu.memory_space<vmem>>, %arg3: memref<1x128xf32, #tpu.memory_space<vmem>>, %arg4: memref<384x128xbf16, #tpu.memory_space<vmem>>, %arg5: memref<1x128xf32, #tpu.memory_space<vmem>>, %arg6: memref<1x128xf32, #tpu.memory_space<vmem>>, %arg7: memref<32x128xf32, #tpu.memory_space<vmem>>, %arg8: memref<2x24x128xf32, #tpu.memory_space<vmem>>) attributes {dimension_semantics = [], scalar_prefetch = 0 : i64, scratch_operands = 1 : i64, tpu.core_type = #tpu.core_type<tc>} {
    %cst = arith.constant 0.000000e+00 : f32
    %0 = vector.broadcast %cst : f32 to vector<2x1x128xf32>
    %c0 = arith.constant 0 : index
    %c0_0 = arith.constant 0 : index
    %c0_1 = arith.constant 0 : index
    %1 = vector.load %arg8[%c0, %c0_0, %c0_1] : memref<2x24x128xf32, #tpu.memory_space<vmem>>, vector<2x1x128xf32>
    tpu.vector_store %arg8[%c0, %c0_0, %c0_1], %0 {strides = array<i32>} : memref<2x24x128xf32, #tpu.memory_space<vmem>>, vector<2x1x128xf32>,
    %c0_2 = arith.constant 0 : index
    %c17 = arith.constant 17 : index
    %c0_3 = arith.constant 0 : index
    %2 = vector.load %arg8[%c0_2, %c17, %c0_3] : memref<2x24x128xf32, #tpu.memory_space<vmem>>, vector<2x1x128xf32>
    tpu.vector_store %arg8[%c0_2, %c17, %c0_3], %0 {strides = array<i32>} : memref<2x24x128xf32, #tpu.memory_space<vmem>>, vector<2x1x128xf32>,
    %c0_4 = arith.constant 0 : index
    %c0_5 = arith.constant 0 : index
    %c0_6 = arith.constant 0 : index
    %3 = vector.load %arg0[%c0_4, %c0_5, %c0_6] : memref<2x16x128xf32, #tpu.memory_space<vmem>>, vector<2x16x128xf32>
    %c0_7 = arith.constant 0 : index
    %c1 = arith.constant 1 : index
    %c0_8 = arith.constant 0 : index
    %4 = vector.load %arg8[%c0_7, %c1, %c0_8] : memref<2x24x128xf32, #tpu.memory_space<vmem>>, vector<2x16x128xf32>
    tpu.vector_store %arg8[%c0_7, %c1, %c0_8], %3 {strides = array<i32>} : memref<2x24x128xf32, #tpu.memory_space<vmem>>, vector<2x16x128xf32>,
    %c0_9 = arith.constant 0 : index
    %c0_10 = arith.constant 0 : index
    %c0_11 = arith.constant 0 : index
    %5 = vector.load %arg8[%c0_9, %c0_10, %c0_11] : memref<2x24x128xf32, #tpu.memory_space<vmem>>, vector<2x16x128xf32>
    %6 = vector.shape_cast %5 : vector<2x16x128xf32> to vector<32x128xf32>
    %7 = arith.truncf %6 : vector<32x128xf32> to vector<32x128xbf16>
    %c0_12 = arith.constant 0 : index
    %c0_13 = arith.constant 0 : index
    %8 = vector.load %arg1[%c0_12, %c0_13] : memref<384x128xbf16, #tpu.memory_space<vmem>>, vector<128x128xbf16>
    %cst_14 = arith.constant dense<0.000000e+00> : vector<32x128xf32>
    %9 = tpu.matmul %7, %8, %cst_14 {dimension_numbers = #tpu.dot_dimension_numbers<[1], [0], [0], [1], [0, 0, 1, 1], [], []>} : vector<32x128xbf16>, vector<128x128xbf16>, vector<32x128xf32> -> vector<32x128xf32>
    %c0_15 = arith.constant 0 : index
    %c1_16 = arith.constant 1 : index
    %c0_17 = arith.constant 0 : index
    %10 = vector.load %arg8[%c0_15, %c1_16, %c0_17] : memref<2x24x128xf32, #tpu.memory_space<vmem>>, vector<2x16x128xf32>
    %11 = vector.shape_cast %10 : vector<2x16x128xf32> to vector<32x128xf32>
    %12 = arith.truncf %11 : vector<32x128xf32> to vector<32x128xbf16>
    %c128 = arith.constant 128 : index
    %c0_18 = arith.constant 0 : index
    %13 = vector.load %arg1[%c128, %c0_18] : memref<384x128xbf16, #tpu.memory_space<vmem>>, vector<128x128xbf16>
    %cst_19 = arith.constant dense<0.000000e+00> : vector<32x128xf32>
    %14 = tpu.matmul %12, %13, %cst_19 {dimension_numbers = #tpu.dot_dimension_numbers<[1], [0], [0], [1], [0, 0, 1, 1], [], []>} : vector<32x128xbf16>, vector<128x128xbf16>, vector<32x128xf32> -> vector<32x128xf32>
    %15 = arith.addf %9, %14 : vector<32x128xf32>
    %c0_20 = arith.constant 0 : index
    %c2 = arith.constant 2 : index
    %c0_21 = arith.constant 0 : index
    %16 = vector.load %arg8[%c0_20, %c2, %c0_21] : memref<2x24x128xf32, #tpu.memory_space<vmem>>, vector<2x16x128xf32>
    %17 = vector.shape_cast %16 : vector<2x16x128xf32> to vector<32x128xf32>
    %18 = arith.truncf %17 : vector<32x128xf32> to vector<32x128xbf16>
    %c256 = arith.constant 256 : index
    %c0_22 = arith.constant 0 : index
    %19 = vector.load %arg1[%c256, %c0_22] : memref<384x128xbf16, #tpu.memory_space<vmem>>, vector<128x128xbf16>
    %cst_23 = arith.constant dense<0.000000e+00> : vector<32x128xf32>
    %20 = tpu.matmul %18, %19, %cst_23 {dimension_numbers = #tpu.dot_dimension_numbers<[1], [0], [0], [1], [0, 0, 1, 1], [], []>} : vector<32x128xbf16>, vector<128x128xbf16>, vector<32x128xf32> -> vector<32x128xf32>
    %21 = arith.addf %15, %20 : vector<32x128xf32>
    %c0_24 = arith.constant 0 : index
    %c0_25 = arith.constant 0 : index
    %22 = vector.load %arg2[%c0_24, %c0_25] : memref<1x128xf32, #tpu.memory_space<vmem>>, vector<1x128xf32>
    %c0_26 = arith.constant 0 : index
    %c0_27 = arith.constant 0 : index
    %23 = vector.load %arg3[%c0_26, %c0_27] : memref<1x128xf32, #tpu.memory_space<vmem>>, vector<1x128xf32>
    %cst_28 = arith.constant dense<0.000000e+00> : vector<128xf32>
    %24 = vector.multi_reduction <add>, %21, %cst_28 [0] : vector<32x128xf32> to vector<128xf32>
    %25 = vector.shape_cast %24 : vector<128xf32> to vector<1x128xf32>
    %26 = arith.mulf %21, %21 : vector<32x128xf32>
    %cst_29 = arith.constant dense<0.000000e+00> : vector<128xf32>
    %27 = vector.multi_reduction <add>, %26, %cst_29 [0] : vector<32x128xf32> to vector<128xf32>
    %28 = vector.shape_cast %27 : vector<128xf32> to vector<1x128xf32>
    %29 = tpu.concatenate %25, %28 in 0 : vector<1x128xf32>, vector<1x128xf32> -> vector<2x128xf32>
    %c8_i32 = arith.constant 8 : i32
    %30 = tpu.dynamic_rotate %29 by %c8_i32 dim 1 : vector<2x128xf32>, i32 -> vector<2x128xf32>
    %31 = arith.addf %29, %30 : vector<2x128xf32>
    %c16_i32 = arith.constant 16 : i32
    %32 = tpu.dynamic_rotate %31 by %c16_i32 dim 1 : vector<2x128xf32>, i32 -> vector<2x128xf32>
    %33 = arith.addf %31, %32 : vector<2x128xf32>
    %c32_i32 = arith.constant 32 : i32
    %34 = tpu.dynamic_rotate %33 by %c32_i32 dim 1 : vector<2x128xf32>, i32 -> vector<2x128xf32>
    %35 = arith.addf %33, %34 : vector<2x128xf32>
    %c64_i32 = arith.constant 64 : i32
    %36 = tpu.dynamic_rotate %35 by %c64_i32 dim 1 : vector<2x128xf32>, i32 -> vector<2x128xf32>
    %37 = arith.addf %35, %36 : vector<2x128xf32>
    %38 = vector.extract_strided_slice %37 {offsets = [0, 0], sizes = [1, 128], strides = [1, 1]} : vector<2x128xf32> to vector<1x128xf32>
    %cst_30 = arith.constant 0.001953125 : f32
    %39 = vector.broadcast %cst_30 : f32 to vector<1x128xf32>
    %40 = arith.mulf %38, %39 : vector<1x128xf32>
    %41 = vector.extract_strided_slice %37 {offsets = [1, 0], sizes = [1, 128], strides = [1, 1]} : vector<2x128xf32> to vector<1x128xf32>
    %cst_31 = arith.constant 0.001953125 : f32
    %42 = vector.broadcast %cst_31 : f32 to vector<1x128xf32>
    %43 = arith.mulf %41, %42 : vector<1x128xf32>
    %44 = arith.mulf %40, %40 : vector<1x128xf32>
    %45 = arith.subf %43, %44 : vector<1x128xf32>
    %cst_32 = arith.constant 9.99999974E-6 : f32
    %46 = vector.broadcast %cst_32 : f32 to vector<1x128xf32>
    %47 = arith.addf %45, %46 : vector<1x128xf32>
    %48 = math.rsqrt %47 : vector<1x128xf32>
    %49 = arith.mulf %22, %48 : vector<1x128xf32>
    %50 = arith.mulf %40, %49 : vector<1x128xf32>
    %51 = arith.subf %23, %50 : vector<1x128xf32>
    %52 = vector.broadcast %49 : vector<1x128xf32> to vector<32x128xf32>
    %53 = arith.mulf %21, %52 : vector<32x128xf32>
    %54 = vector.broadcast %51 : vector<1x128xf32> to vector<32x128xf32>
    %55 = arith.addf %53, %54 : vector<32x128xf32>
    %cst_33 = arith.constant 0.000000e+00 : f32
    %56 = vector.broadcast %cst_33 : f32 to vector<32x128xf32>
    %57 = arith.maximumf %55, %56 : vector<32x128xf32>
    %58 = vector.shape_cast %57 : vector<32x128xf32> to vector<2x16x128xf32>
    %c0_34 = arith.constant 0 : index
    %c1_35 = arith.constant 1 : index
    %c0_36 = arith.constant 0 : index
    %59 = vector.load %arg8[%c0_34, %c1_35, %c0_36] : memref<2x24x128xf32, #tpu.memory_space<vmem>>, vector<2x16x128xf32>
    tpu.vector_store %arg8[%c0_34, %c1_35, %c0_36], %58 {strides = array<i32>} : memref<2x24x128xf32, #tpu.memory_space<vmem>>, vector<2x16x128xf32>,
    %c0_37 = arith.constant 0 : index
    %c0_38 = arith.constant 0 : index
    %c0_39 = arith.constant 0 : index
    %60 = vector.load %arg8[%c0_37, %c0_38, %c0_39] : memref<2x24x128xf32, #tpu.memory_space<vmem>>, vector<2x16x128xf32>
    %61 = vector.shape_cast %60 : vector<2x16x128xf32> to vector<32x128xf32>
    %62 = arith.truncf %61 : vector<32x128xf32> to vector<32x128xbf16>
    %c0_40 = arith.constant 0 : index
    %c0_41 = arith.constant 0 : index
    %63 = vector.load %arg4[%c0_40, %c0_41] : memref<384x128xbf16, #tpu.memory_space<vmem>>, vector<128x128xbf16>
    %cst_42 = arith.constant dense<0.000000e+00> : vector<32x128xf32>
    %64 = tpu.matmul %62, %63, %cst_42 {dimension_numbers = #tpu.dot_dimension_numbers<[1], [0], [0], [1], [0, 0, 1, 1], [], []>} : vector<32x128xbf16>, vector<128x128xbf16>, vector<32x128xf32> -> vector<32x128xf32>
    %c0_43 = arith.constant 0 : index
    %c1_44 = arith.constant 1 : index
    %c0_45 = arith.constant 0 : index
    %65 = vector.load %arg8[%c0_43, %c1_44, %c0_45] : memref<2x24x128xf32, #tpu.memory_space<vmem>>, vector<2x16x128xf32>
    %66 = vector.shape_cast %65 : vector<2x16x128xf32> to vector<32x128xf32>
    %67 = arith.truncf %66 : vector<32x128xf32> to vector<32x128xbf16>
    %c128_46 = arith.constant 128 : index
    %c0_47 = arith.constant 0 : index
    %68 = vector.load %arg4[%c128_46, %c0_47] : memref<384x128xbf16, #tpu.memory_space<vmem>>, vector<128x128xbf16>
    %cst_48 = arith.constant dense<0.000000e+00> : vector<32x128xf32>
    %69 = tpu.matmul %67, %68, %cst_48 {dimension_numbers = #tpu.dot_dimension_numbers<[1], [0], [0], [1], [0, 0, 1, 1], [], []>} : vector<32x128xbf16>, vector<128x128xbf16>, vector<32x128xf32> -> vector<32x128xf32>
    %70 = arith.addf %64, %69 : vector<32x128xf32>
    %c0_49 = arith.constant 0 : index
    %c2_50 = arith.constant 2 : index
    %c0_51 = arith.constant 0 : index
    %71 = vector.load %arg8[%c0_49, %c2_50, %c0_51] : memref<2x24x128xf32, #tpu.memory_space<vmem>>, vector<2x16x128xf32>
    %72 = vector.shape_cast %71 : vector<2x16x128xf32> to vector<32x128xf32>
    %73 = arith.truncf %72 : vector<32x128xf32> to vector<32x128xbf16>
    %c256_52 = arith.constant 256 : index
    %c0_53 = arith.constant 0 : index
    %74 = vector.load %arg4[%c256_52, %c0_53] : memref<384x128xbf16, #tpu.memory_space<vmem>>, vector<128x128xbf16>
    %cst_54 = arith.constant dense<0.000000e+00> : vector<32x128xf32>
    %75 = tpu.matmul %73, %74, %cst_54 {dimension_numbers = #tpu.dot_dimension_numbers<[1], [0], [0], [1], [0, 0, 1, 1], [], []>} : vector<32x128xbf16>, vector<128x128xbf16>, vector<32x128xf32> -> vector<32x128xf32>
    %76 = arith.addf %70, %75 : vector<32x128xf32>
    %c0_55 = arith.constant 0 : index
    %c0_56 = arith.constant 0 : index
    %77 = vector.load %arg5[%c0_55, %c0_56] : memref<1x128xf32, #tpu.memory_space<vmem>>, vector<1x128xf32>
    %c0_57 = arith.constant 0 : index
    %c0_58 = arith.constant 0 : index
    %78 = vector.load %arg6[%c0_57, %c0_58] : memref<1x128xf32, #tpu.memory_space<vmem>>, vector<1x128xf32>
    %cst_59 = arith.constant dense<0.000000e+00> : vector<128xf32>
    %79 = vector.multi_reduction <add>, %76, %cst_59 [0] : vector<32x128xf32> to vector<128xf32>
    %80 = vector.shape_cast %79 : vector<128xf32> to vector<1x128xf32>
    %81 = arith.mulf %76, %76 : vector<32x128xf32>
    %cst_60 = arith.constant dense<0.000000e+00> : vector<128xf32>
    %82 = vector.multi_reduction <add>, %81, %cst_60 [0] : vector<32x128xf32> to vector<128xf32>
    %83 = vector.shape_cast %82 : vector<128xf32> to vector<1x128xf32>
    %84 = tpu.concatenate %80, %83 in 0 : vector<1x128xf32>, vector<1x128xf32> -> vector<2x128xf32>
    %c8_i32_61 = arith.constant 8 : i32
    %85 = tpu.dynamic_rotate %84 by %c8_i32_61 dim 1 : vector<2x128xf32>, i32 -> vector<2x128xf32>
    %86 = arith.addf %84, %85 : vector<2x128xf32>
    %c16_i32_62 = arith.constant 16 : i32
    %87 = tpu.dynamic_rotate %86 by %c16_i32_62 dim 1 : vector<2x128xf32>, i32 -> vector<2x128xf32>
    %88 = arith.addf %86, %87 : vector<2x128xf32>
    %c32_i32_63 = arith.constant 32 : i32
    %89 = tpu.dynamic_rotate %88 by %c32_i32_63 dim 1 : vector<2x128xf32>, i32 -> vector<2x128xf32>
    %90 = arith.addf %88, %89 : vector<2x128xf32>
    %c64_i32_64 = arith.constant 64 : i32
    %91 = tpu.dynamic_rotate %90 by %c64_i32_64 dim 1 : vector<2x128xf32>, i32 -> vector<2x128xf32>
    %92 = arith.addf %90, %91 : vector<2x128xf32>
    %93 = vector.extract_strided_slice %92 {offsets = [0, 0], sizes = [1, 128], strides = [1, 1]} : vector<2x128xf32> to vector<1x128xf32>
    %cst_65 = arith.constant 0.001953125 : f32
    %94 = vector.broadcast %cst_65 : f32 to vector<1x128xf32>
    %95 = arith.mulf %93, %94 : vector<1x128xf32>
    %96 = vector.extract_strided_slice %92 {offsets = [1, 0], sizes = [1, 128], strides = [1, 1]} : vector<2x128xf32> to vector<1x128xf32>
    %cst_66 = arith.constant 0.001953125 : f32
    %97 = vector.broadcast %cst_66 : f32 to vector<1x128xf32>
    %98 = arith.mulf %96, %97 : vector<1x128xf32>
    %99 = arith.mulf %95, %95 : vector<1x128xf32>
    %100 = arith.subf %98, %99 : vector<1x128xf32>
    %cst_67 = arith.constant 9.99999974E-6 : f32
    %101 = vector.broadcast %cst_67 : f32 to vector<1x128xf32>
    %102 = arith.addf %100, %101 : vector<1x128xf32>
    %103 = math.rsqrt %102 : vector<1x128xf32>
    %104 = arith.mulf %77, %103 : vector<1x128xf32>
    %105 = arith.mulf %95, %104 : vector<1x128xf32>
    %106 = arith.subf %78, %105 : vector<1x128xf32>
    %107 = vector.broadcast %104 : vector<1x128xf32> to vector<32x128xf32>
    %108 = arith.mulf %76, %107 : vector<32x128xf32>
    %109 = vector.broadcast %106 : vector<1x128xf32> to vector<32x128xf32>
    %110 = arith.addf %108, %109 : vector<32x128xf32>
    %111 = vector.shape_cast %3 : vector<2x16x128xf32> to vector<32x128xf32>
    %112 = arith.addf %110, %111 : vector<32x128xf32>
    %cst_68 = arith.constant 0.000000e+00 : f32
    %113 = vector.broadcast %cst_68 : f32 to vector<32x128xf32>
    %114 = arith.maximumf %112, %113 : vector<32x128xf32>
    %c0_69 = arith.constant 0 : index
    %c0_70 = arith.constant 0 : index
    %115 = vector.load %arg7[%c0_69, %c0_70] : memref<32x128xf32, #tpu.memory_space<vmem>>, vector<32x128xf32>
    tpu.vector_store %arg7[%c0_69, %c0_70], %114 {strides = array<i32>} : memref<32x128xf32, #tpu.memory_space<vmem>>, vector<32x128xf32>,
    return
  }
}

</mosaic_0001>

<llo_original>
// kernel: _basic_block_pallas.1
$region0: #{_basic_block_pallas.1}
  #allocation0 [shape = 'u32[]', space=smem, size = 0x4, offset = 0x4, fixed_abs, tag = 'smem constant byte address 0x4 - core index']
  #allocation1 [shape = 'u32[72,128]{1,0:T(1,128)}', space=vmem, size = 0x9000, scoped, tag = 'internal scratch']
  #allocation2 [shape = 'f32[2,24,128]{2,1,0:T(8,128)}', space=vmem, size = 0x6000, scoped, tag = 'scratch operand']
  %s0 = inlined_call_operand.vmem [shape: f32[2,16,128], index: 0, kind: input, shape index: {}]
  %s1 = inlined_call_operand.vmem [shape: bf16[384,128], index: 1, kind: input, shape index: {}]
  %s2 = inlined_call_operand.vmem [shape: f32[1,128], index: 2, kind: input, shape index: {}]
  %s3 = inlined_call_operand.vmem [shape: f32[1,128], index: 3, kind: input, shape index: {}]
  %s4 = inlined_call_operand.vmem [shape: bf16[384,128], index: 4, kind: input, shape index: {}]
  %s5 = inlined_call_operand.vmem [shape: f32[1,128], index: 5, kind: input, shape index: {}]
  %s6 = inlined_call_operand.vmem [shape: f32[1,128], index: 6, kind: input, shape index: {}]
  %s7 = inlined_call_operand.vmem [shape: f32[32,128], index: 7, kind: output, shape index: {}]
  %s8 = sld [smem:[#allocation0]]
  $region38: #{_basic_block_pallas.1} parent=0
    _
  %s10 = ssub.s32 1, %s8
  %s11 = scalar_select 0, %s10, %s8
  // Predicated region
  $region2: #{_basic_block_pallas.1} parent=0 // pred_check
    _
  $region3: #{_basic_block_pallas.1} parent=0 // pred_check_branch
    %13 = sbr.rel (0) target = $region5
  $region4: #{_basic_block_pallas.1} parent=0 // pred_region
    _
  $region5: #{_basic_block_pallas.1} parent=0 // pred_fallthru
    _
  // Predicated region
  $region6: #{_basic_block_pallas.1} parent=0 // pred_check
    _
  $region7: #{_basic_block_pallas.1} parent=0 // pred_check_branch
    %15 = sbr.rel (0) target = $region9
  $region8: #{_basic_block_pallas.1} parent=0 // pred_region
    _
  $region9: #{_basic_block_pallas.1} parent=0 // pred_fallthru
    _
  // Predicated region
  $region10: #{_basic_block_pallas.1} parent=0 // pred_check
    _
  $region11: #{_basic_block_pallas.1} parent=0 // pred_check_branch
    %17 = sbr.rel (0) target = $region13
  $region12: #{_basic_block_pallas.1} parent=0 // pred_region
    _
  $region13: #{_basic_block_pallas.1} parent=0 // pred_fallthru
    _
  // Predicated region
  $region14: #{_basic_block_pallas.1} parent=0 // pred_check
    _
  $region15: #{_basic_block_pallas.1} parent=0 // pred_check_branch
    %19 = sbr.rel (0) target = $region17
  $region16: #{_basic_block_pallas.1} parent=0 // pred_region
    _
  $region17: #{_basic_block_pallas.1} parent=0 // pred_fallthru
    _
  // Predicated region
  $region18: #{_basic_block_pallas.1} parent=0 // pred_check
    _
  $region19: #{_basic_block_pallas.1} parent=0 // pred_check_branch
    %21 = sbr.rel (0) target = $region21
  $region20: #{_basic_block_pallas.1} parent=0 // pred_region
    _
  $region21: #{_basic_block_pallas.1} parent=0 // pred_fallthru
    _
  // Predicated region
  $region22: #{_basic_block_pallas.1} parent=0 // pred_check
    _
  $region23: #{_basic_block_pallas.1} parent=0 // pred_check_branch
    %23 = sbr.rel (0) target = $region25
  $region24: #{_basic_block_pallas.1} parent=0 // pred_region
    _
  $region25: #{_basic_block_pallas.1} parent=0 // pred_fallthru
    _
  // Predicated region
  $region26: #{_basic_block_pallas.1} parent=0 // pred_check
    _
  $region27: #{_basic_block_pallas.1} parent=0 // pred_check_branch
    %25 = sbr.rel (0) target = $region29
  $region28: #{_basic_block_pallas.1} parent=0 // pred_region
    _
  $region29: #{_basic_block_pallas.1} parent=0 // pred_fallthru
    _
  %26 = vst [vmem:[#allocation2] sm:$0x1] 0.0
  %27 = vst [vmem:[#allocation2 + $0x18] sm:$0x1] 0.0
  %28 = vst [vmem:[#allocation2 + $0x11] sm:$0x1] 0.0
  %29 = vst [vmem:[#allocation2 + $0x29] sm:$0x1] 0.0
  %v30 = vld [vmem:[%s0] sm:$0xff]
  %v31 = vld [vmem:[%s0 + $0x8] sm:$0xff]
  %v32 = vld [vmem:[%s0 + $0x10] sm:$0xff]
  %v33 = vld [vmem:[%s0 + $0x18] sm:$0xff]
  %34 = vst [vmem:[#allocation2 + $0x1] sm:$0xff] %v30
  %35 = vst [vmem:[#allocation2 + $0x9] sm:$0xff] %v31
  %36 = vst [vmem:[#allocation2 + $0x19] sm:$0xff] %v32
  %37 = vst [vmem:[#allocation2 + $0x21] sm:$0xff] %v33
  %v38 = vld [vmem:[#allocation2] sm:$0xff]
  %v39 = vld [vmem:[#allocation2 + $0x8] sm:$0xff]
  %v40 = vld [vmem:[#allocation2 + $0x18] sm:$0xff]
  %v41 = vld [vmem:[#allocation2 + $0x20] sm:$0xff]
  %v42 = vpack.c.bf16 %v39, %v38
  %v43 = vpack.c.bf16 %v41, %v40
  %v44 = vld [vmem:[%s1] sm:$0xf]
  %v45 = vld [vmem:[%s1 + $0x4] sm:$0xf]
  %v46 = vld [vmem:[%s1 + $0x8] sm:$0xf]
  %v47 = vld [vmem:[%s1 + $0xc] sm:$0xf]
  %v48 = vld [vmem:[%s1 + $0x10] sm:$0xf]
  %v49 = vld [vmem:[%s1 + $0x14] sm:$0xf]
  %v50 = vld [vmem:[%s1 + $0x18] sm:$0xf]
  %v51 = vld [vmem:[%s1 + $0x1c] sm:$0xf]
  %v52 = vld [vmem:[%s1 + $0x20] sm:$0xf]
  %v53 = vld [vmem:[%s1 + $0x24] sm:$0xf]
  %v54 = vld [vmem:[%s1 + $0x28] sm:$0xf]
  %v55 = vld [vmem:[%s1 + $0x2c] sm:$0xf]
  %v56 = vld [vmem:[%s1 + $0x30] sm:$0xf]
  %v57 = vld [vmem:[%s1 + $0x34] sm:$0xf]
  %v58 = vld [vmem:[%s1 + $0x38] sm:$0xf]
  %v59 = vld [vmem:[%s1 + $0x3c] sm:$0xf]
  %v60 = vld [vmem:[#allocation2 + $0x1] sm:$0xff]
  %v61 = vld [vmem:[#allocation2 + $0x9] sm:$0xff]
  %v62 = vld [vmem:[#allocation2 + $0x19] sm:$0xff]
  %v63 = vld [vmem:[#allocation2 + $0x21] sm:$0xff]
  %v64 = vpack.c.bf16 %v61, %v60
  %v65 = vpack.c.bf16 %v63, %v62
  %v66 = vld [vmem:[%s1 + $0x40] sm:$0xf]
  %v67 = vld [vmem:[%s1 + $0x44] sm:$0xf]
  %v68 = vld [vmem:[%s1 + $0x48] sm:$0xf]
  %v69 = vld [vmem:[%s1 + $0x4c] sm:$0xf]
  %v70 = vld [vmem:[%s1 + $0x50] sm:$0xf]
  %v71 = vld [vmem:[%s1 + $0x54] sm:$0xf]
  %v72 = vld [vmem:[%s1 + $0x58] sm:$0xf]
  %v73 = vld [vmem:[%s1 + $0x5c] sm:$0xf]
  %v74 = vld [vmem:[%s1 + $0x60] sm:$0xf]
  %v75 = vld [vmem:[%s1 + $0x64] sm:$0xf]
  %v76 = vld [vmem:[%s1 + $0x68] sm:$0xf]
  %v77 = vld [vmem:[%s1 + $0x6c] sm:$0xf]
  %v78 = vld [vmem:[%s1 + $0x70] sm:$0xf]
  %v79 = vld [vmem:[%s1 + $0x74] sm:$0xf]
  %v80 = vld [vmem:[%s1 + $0x78] sm:$0xf]
  %v81 = vld [vmem:[%s1 + $0x7c] sm:$0xf]
  %v98 = vunpack.c.l.b16 %v66
  %v99 = vunpack.c.l.b16 %v67
  %v100 = vunpack.c.l.b16 %v68
  %v101 = vunpack.c.l.b16 %v69
  %v102 = vunpack.c.l.b16 %v70
  %v103 = vunpack.c.l.b16 %v71
  %v104 = vunpack.c.l.b16 %v72
  %v105 = vunpack.c.l.b16 %v73
  %v106 = vunpack.c.l.b16 %v74
  %v107 = vunpack.c.l.b16 %v75
  %v108 = vunpack.c.l.b16 %v76
  %v109 = vunpack.c.l.b16 %v77
  %v110 = vunpack.c.l.b16 %v78
  %v111 = vunpack.c.l.b16 %v79
  %v112 = vunpack.c.l.b16 %v80
  %v113 = vunpack.c.l.b16 %v81
  %v114 = vpack.c.b16 %v99, %v98
  %v115 = vpack.c.b16 %v101, %v100
  %v116 = vpack.c.b16 %v103, %v102
  %v117 = vpack.c.b16 %v105, %v104
  %v118 = vpack.c.b16 %v107, %v106
  %v119 = vpack.c.b16 %v109, %v108
  %v120 = vpack.c.b16 %v111, %v110
  %v121 = vpack.c.b16 %v113, %v112
  %130 = vmatpush.bf16.msra.mxu0 %v121
  %131 = vmatpush.bf16.msra.mxu0 %v120
  %132 = vmatpush.bf16.msra.mxu0 %v119
  %133 = vmatpush.bf16.msra.mxu0 %v118
  %134 = vmatpush.bf16.msra.mxu0 %v117
  %135 = vmatpush.bf16.msra.mxu0 %v116
  %136 = vmatpush.bf16.msra.mxu0 %v115
  %137 = vmatpush.bf16.msra.mxu0 %v114
  %138 = vmatmul.bf16.gmra.mxu0 %v64
  %v139 = vpop.f32.mrf.mxu0
  %v140 = vadd.f32 0.0, %v139
  %v141 = vpop.f32.mrf.mxu0
  %v142 = vadd.f32 0.0, %v141
  %143 = vmatmul.bf16.gmra.mxu0 %v65
  %v144 = vpop.f32.mrf.mxu0
  %v145 = vadd.f32 0.0, %v144
  %v146 = vpop.f32.mrf.mxu0
  %v147 = vadd.f32 0.0, %v146
  %148 = vdwg.mxu0
  %v165 = vunpack.c.l.b16 %v44
  %v166 = vunpack.c.l.b16 %v45
  %v167 = vunpack.c.l.b16 %v46
  %v168 = vunpack.c.l.b16 %v47
  %v169 = vunpack.c.l.b16 %v48
  %v170 = vunpack.c.l.b16 %v49
  %v171 = vunpack.c.l.b16 %v50
  %v172 = vunpack.c.l.b16 %v51
  %v173 = vunpack.c.l.b16 %v52
  %v174 = vunpack.c.l.b16 %v53
  %v175 = vunpack.c.l.b16 %v54
  %v176 = vunpack.c.l.b16 %v55
  %v177 = vunpack.c.l.b16 %v56
  %v178 = vunpack.c.l.b16 %v57
  %v179 = vunpack.c.l.b16 %v58
  %v180 = vunpack.c.l.b16 %v59
  %v181 = vpack.c.b16 %v166, %v165
  %v182 = vpack.c.b16 %v168, %v167
  %v183 = vpack.c.b16 %v170, %v169
  %v184 = vpack.c.b16 %v172, %v171
  %v185 = vpack.c.b16 %v174, %v173
  %v186 = vpack.c.b16 %v176, %v175
  %v187 = vpack.c.b16 %v178, %v177
  %v188 = vpack.c.b16 %v180, %v179
  %197 = vmatpush.bf16.msra.mxu0 %v188
  %198 = vmatpush.bf16.msra.mxu0 %v187
  %199 = vmatpush.bf16.msra.mxu0 %v186
  %200 = vmatpush.bf16.msra.mxu0 %v185
  %201 = vmatpush.bf16.msra.mxu0 %v184
  %202 = vmatpush.bf16.msra.mxu0 %v183
  %203 = vmatpush.bf16.msra.mxu0 %v182
  %204 = vmatpush.bf16.msra.mxu0 %v181
  %205 = vmatmul.bf16.gmra.mxu0 %v42
  %v206 = vpop.f32.mrf.mxu0
  %v207 = vadd.f32 %v140, %v206
  %v208 = vpop.f32.mrf.mxu0
  %v209 = vadd.f32 %v142, %v208
  %210 = vmatmul.bf16.gmra.mxu0 %v43
  %v211 = vpop.f32.mrf.mxu0
  %v212 = vadd.f32 %v145, %v211
  %v213 = vpop.f32.mrf.mxu0
  %v214 = vadd.f32 %v147, %v213
  %215 = vdwg.mxu0
  %v216 = vld [vmem:[#allocation2 + $0x2] sm:$0xff]
  %v217 = vld [vmem:[#allocation2 + $0xa] sm:$0xff]
  %v218 = vld [vmem:[#allocation2 + $0x1a] sm:$0xff]
  %v219 = vld [vmem:[#allocation2 + $0x22] sm:$0xff]
  %v220 = vpack.c.bf16 %v217, %v216
  %v221 = vpack.c.bf16 %v219, %v218
  %v222 = vld [vmem:[%s1 + $0x80] sm:$0xf]
  %v223 = vld [vmem:[%s1 + $0x84] sm:$0xf]
  %v224 = vld [vmem:[%s1 + $0x88] sm:$0xf]
  %v225 = vld [vmem:[%s1 + $0x8c] sm:$0xf]
  %v226 = vld [vmem:[%s1 + $0x90] sm:$0xf]
  %v227 = vld [vmem:[%s1 + $0x94] sm:$0xf]
  %v228 = vld [vmem:[%s1 + $0x98] sm:$0xf]
  %v229 = vld [vmem:[%s1 + $0x9c] sm:$0xf]
  %v230 = vld [vmem:[%s1 + $0xa0] sm:$0xf]
  %v231 = vld [vmem:[%s1 + $0xa4] sm:$0xf]
  %v232 = vld [vmem:[%s1 + $0xa8] sm:$0xf]
  %v233 = vld [vmem:[%s1 + $0xac] sm:$0xf]
  %v234 = vld [vmem:[%s1 + $0xb0] sm:$0xf]
  %v235 = vld [vmem:[%s1 + $0xb4] sm:$0xf]
  %v236 = vld [vmem:[%s1 + $0xb8] sm:$0xf]
  %v237 = vld [vmem:[%s1 + $0xbc] sm:$0xf]
  %v254 = vunpack.c.l.b16 %v222
  %v255 = vunpack.c.l.b16 %v223
  %v256 = vunpack.c.l.b16 %v224
  %v257 = vunpack.c.l.b16 %v225
  %v258 = vunpack.c.l.b16 %v226
  %v259 = vunpack.c.l.b16 %v227
  %v260 = vunpack.c.l.b16 %v228
  %v261 = vunpack.c.l.b16 %v229
  %v262 = vunpack.c.l.b16 %v230
  %v263 = vunpack.c.l.b16 %v231
  %v264 = vunpack.c.l.b16 %v232
  %v265 = vunpack.c.l.b16 %v233
  %v266 = vunpack.c.l.b16 %v234
  %v267 = vunpack.c.l.b16 %v235
  %v268 = vunpack.c.l.b16 %v236
  %v269 = vunpack.c.l.b16 %v237
  %v270 = vpack.c.b16 %v255, %v254
  %v271 = vpack.c.b16 %v257, %v256
  %v272 = vpack.c.b16 %v259, %v258
  %v273 = vpack.c.b16 %v261, %v260
  %v274 = vpack.c.b16 %v263, %v262
  %v275 = vpack.c.b16 %v265, %v264
  %v276 = vpack.c.b16 %v267, %v266
  %v277 = vpack.c.b16 %v269, %v268
  %286 = vmatpush.bf16.msra.mxu0 %v277
  %287 = vmatpush.bf16.msra.mxu0 %v276
  %288 = vmatpush.bf16.msra.mxu0 %v275
  %289 = vmatpush.bf16.msra.mxu0 %v274
  %290 = vmatpush.bf16.msra.mxu0 %v273
  %291 = vmatpush.bf16.msra.mxu0 %v272
  %292 = vmatpush.bf16.msra.mxu0 %v271
  %293 = vmatpush.bf16.msra.mxu0 %v270
  %294 = vmatmul.bf16.gmra.mxu0 %v220
  %v295 = vpop.f32.mrf.mxu0
  %v296 = vadd.f32 0.0, %v295
  %v297 = vpop.f32.mrf.mxu0
  %v298 = vadd.f32 0.0, %v297
  %299 = vmatmul.bf16.gmra.mxu0 %v221
  %v300 = vpop.f32.mrf.mxu0
  %v301 = vadd.f32 0.0, %v300
  %v302 = vpop.f32.mrf.mxu0
  %v303 = vadd.f32 0.0, %v302
  %304 = vdwg.mxu0
  %v305 = vadd.f32 %v207, %v296
  %v306 = vadd.f32 %v209, %v298
  %v307 = vadd.f32 %v212, %v301
  %v308 = vadd.f32 %v214, %v303
  %v309 = vld [vmem:[%s2] sm:$0x1]
  %v310 = vld [vmem:[%s3] sm:$0x1]
  %v311 = vadd.f32 %v305, %v306
  %v312 = vadd.f32 %v311, %v307
  %v313 = vadd.f32 %v312, %v308
  %v314 = vrot.slane %v313, 4
  %v315 = vadd.f32 %v313, %v314
  %v316 = vrot.slane %v315, 2
  %v317 = vadd.f32 %v315, %v316
  %v318 = vrot.slane %v317, 1
  %v319 = vadd.f32 %v317, %v318
  %v320 = vmul.f32 %v305, %v305
  %v321 = vmul.f32 %v306, %v306
  %v322 = vmul.f32 %v307, %v307
  %v323 = vmul.f32 %v308, %v308
  %v324 = vadd.f32 %v320, %v321
  %v325 = vadd.f32 %v324, %v322
  %v326 = vadd.f32 %v325, %v323
  %v327 = vrot.slane %v326, 4
  %v328 = vadd.f32 %v326, %v327
  %v329 = vrot.slane %v328, 2
  %v330 = vadd.f32 %v328, %v329
  %v331 = vrot.slane %v330, 1
  %v332 = vadd.f32 %v330, %v331
  %vm333 = vcmask 1040384
  %v334 = vsel %vm333, %v319, %v332
  %335 = vrot.lane.b32.xlu0 %v334, 8
  %v336 = vpop.permute.xlu0 %335
  %v337 = vadd.f32 %v334, %v336
  %338 = vrot.lane.b32.xlu0 %v337, 16
  %v339 = vpop.permute.xlu0 %338
  %v340 = vadd.f32 %v337, %v339
  %341 = vrot.lane.b32.xlu0 %v340, 32
  %v342 = vpop.permute.xlu0 %341
  %v343 = vadd.f32 %v340, %v342
  %344 = vrot.lane.b32.xlu0 %v343, 64
  %v345 = vpop.permute.xlu0 %344
  %v346 = vadd.f32 %v343, %v345
  %v347 = vmul.f32 %v346, 0.001953125
  %v348 = vmul.f32 %v347, %v347
  %v350 = vrot.slane %v348, 7
  %v352 = vsub.f32 %v347, %v350
  %v353 = vadd.f32 %v352, 1e-05
  %v354 = vrsqrt.pop %v353
  %v355 = vmul.f32 %v354, %v353
  %v356 = vmul.f32 %v355, %v354
  %v357 = vmul.f32 0.5, %v356
  %v358 = vsub.f32 1.5, %v357
  %v359 = vmul.f32 %v354, %v358
  %vm360 = vweird.f32 %v353
  %vm361 = vweird.f32 %v354
  %vm362 = vmor %vm360, %vm361
  %v363 = vsel %vm362, %v354, %v359
  %365 = vst [vmem:[#allocation1] sm:$0xff] %v363
  %s366 = scalar_lea.vmem [#allocation1], 1
  %v367 = vld [vmem:[%s366] ss:$9 sm:$0xff]
  %v369 = vmul.f32 %v309, %v367
  %v370 = vmul.f32 %v347, %v369
  %v371 = vsub.f32 %v310, %v370
  %v373 = vperm.slane %v369, 0
  %v375 = vmul.f32 %v305, %v373
  %v376 = vmul.f32 %v306, %v373
  %v377 = vmul.f32 %v307, %v373
  %v378 = vmul.f32 %v308, %v373
  %v380 = vperm.slane %v371, 0
  %v382 = vadd.f32 %v375, %v380
  %v383 = vadd.f32 %v376, %v380
  %v384 = vadd.f32 %v377, %v380
  %v385 = vadd.f32 %v378, %v380
  %v386 = vmax.f32 %v382, 0.0
  %v387 = vmax.f32 %v383, 0.0
  %v388 = vmax.f32 %v384, 0.0
  %v389 = vmax.f32 %v385, 0.0
  %390 = vst [vmem:[#allocation2 + $0x1] sm:$0xff] %v386
  %391 = vst [vmem:[#allocation2 + $0x9] sm:$0xff] %v387
  %392 = vst [vmem:[#allocation2 + $0x19] sm:$0xff] %v388
  %393 = vst [vmem:[#allocation2 + $0x21] sm:$0xff] %v389
  %v394 = vld [vmem:[#allocation2] sm:$0xff]
  %v395 = vld [vmem:[#allocation2 + $0x8] sm:$0xff]
  %v396 = vld [vmem:[#allocation2 + $0x18] sm:$0xff]
  %v397 = vld [vmem:[#allocation2 + $0x20] sm:$0xff]
  %v398 = vpack.c.bf16 %v395, %v394
  %v399 = vpack.c.bf16 %v397, %v396
  %v400 = vld [vmem:[%s4] sm:$0xf]
  %v401 = vld [vmem:[%s4 + $0x4] sm:$0xf]
  %v402 = vld [vmem:[%s4 + $0x8] sm:$0xf]
  %v403 = vld [vmem:[%s4 + $0xc] sm:$0xf]
  %v404 = vld [vmem:[%s4 + $0x10] sm:$0xf]
  %v405 = vld [vmem:[%s4 + $0x14] sm:$0xf]
  %v406 = vld [vmem:[%s4 + $0x18] sm:$0xf]
  %v407 = vld [vmem:[%s4 + $0x1c] sm:$0xf]
  %v408 = vld [vmem:[%s4 + $0x20] sm:$0xf]
  %v409 = vld [vmem:[%s4 + $0x24] sm:$0xf]
  %v410 = vld [vmem:[%s4 + $0x28] sm:$0xf]
  %v411 = vld [vmem:[%s4 + $0x2c] sm:$0xf]
  %v412 = vld [vmem:[%s4 + $0x30] sm:$0xf]
  %v413 = vld [vmem:[%s4 + $0x34] sm:$0xf]
  %v414 = vld [vmem:[%s4 + $0x38] sm:$0xf]
  %v415 = vld [vmem:[%s4 + $0x3c] sm:$0xf]
  %v416 = vld [vmem:[#allocation2 + $0x1] sm:$0xff]
  %v417 = vld [vmem:[#allocation2 + $0x9] sm:$0xff]
  %v418 = vld [vmem:[#allocation2 + $0x19] sm:$0xff]
  %v419 = vld [vmem:[#allocation2 + $0x21] sm:$0xff]
  %v420 = vpack.c.bf16 %v417, %v416
  %v421 = vpack.c.bf16 %v419, %v418
  %v422 = vld [vmem:[%s4 + $0x40] sm:$0xf]
  %v423 = vld [vmem:[%s4 + $0x44] sm:$0xf]
  %v424 = vld [vmem:[%s4 + $0x48] sm:$0xf]
  %v425 = vld [vmem:[%s4 + $0x4c] sm:$0xf]
  %v426 = vld [vmem:[%s4 + $0x50] sm:$0xf]
  %v427 = vld [vmem:[%s4 + $0x54] sm:$0xf]
  %v428 = vld [vmem:[%s4 + $0x58] sm:$0xf]
  %v429 = vld [vmem:[%s4 + $0x5c] sm:$0xf]
  %v430 = vld [vmem:[%s4 + $0x60] sm:$0xf]
  %v431 = vld [vmem:[%s4 + $0x64] sm:$0xf]
  %v432 = vld [vmem:[%s4 + $0x68] sm:$0xf]
  %v433 = vld [vmem:[%s4 + $0x6c] sm:$0xf]
  %v434 = vld [vmem:[%s4 + $0x70] sm:$0xf]
  %v435 = vld [vmem:[%s4 + $0x74] sm:$0xf]
  %v436 = vld [vmem:[%s4 + $0x78] sm:$0xf]
  %v437 = vld [vmem:[%s4 + $0x7c] sm:$0xf]
  %v454 = vunpack.c.l.b16 %v422
  %v455 = vunpack.c.l.b16 %v423
  %v456 = vunpack.c.l.b16 %v424
  %v457 = vunpack.c.l.b16 %v425
  %v458 = vunpack.c.l.b16 %v426
  %v459 = vunpack.c.l.b16 %v427
  %v460 = vunpack.c.l.b16 %v428
  %v461 = vunpack.c.l.b16 %v429
  %v462 = vunpack.c.l.b16 %v430
  %v463 = vunpack.c.l.b16 %v431
  %v464 = vunpack.c.l.b16 %v432
  %v465 = vunpack.c.l.b16 %v433
  %v466 = vunpack.c.l.b16 %v434
  %v467 = vunpack.c.l.b16 %v435
  %v468 = vunpack.c.l.b16 %v436
  %v469 = vunpack.c.l.b16 %v437
  %v470 = vpack.c.b16 %v455, %v454
  %v471 = vpack.c.b16 %v457, %v456
  %v472 = vpack.c.b16 %v459, %v458
  %v473 = vpack.c.b16 %v461, %v460
  %v474 = vpack.c.b16 %v463, %v462
  %v475 = vpack.c.b16 %v465, %v464
  %v476 = vpack.c.b16 %v467, %v466
  %v477 = vpack.c.b16 %v469, %v468
  %486 = vmatpush.bf16.msra.mxu0 %v477
  %487 = vmatpush.bf16.msra.mxu0 %v476
  %488 = vmatpush.bf16.msra.mxu0 %v475
  %489 = vmatpush.bf16.msra.mxu0 %v474
  %490 = vmatpush.bf16.msra.mxu0 %v473
  %491 = vmatpush.bf16.msra.mxu0 %v472
  %492 = vmatpush.bf16.msra.mxu0 %v471
  %493 = vmatpush.bf16.msra.mxu0 %v470
  %494 = vmatmul.bf16.gmra.mxu0 %v420
  %v495 = vpop.f32.mrf.mxu0
  %v496 = vadd.f32 0.0, %v495
  %v497 = vpop.f32.mrf.mxu0
  %v498 = vadd.f32 0.0, %v497
  %499 = vmatmul.bf16.gmra.mxu0 %v421
  %v500 = vpop.f32.mrf.mxu0
  %v501 = vadd.f32 0.0, %v500
  %v502 = vpop.f32.mrf.mxu0
  %v503 = vadd.f32 0.0, %v502
  %504 = vdwg.mxu0
  %v521 = vunpack.c.l.b16 %v400
  %v522 = vunpack.c.l.b16 %v401
  %v523 = vunpack.c.l.b16 %v402
  %v524 = vunpack.c.l.b16 %v403
  %v525 = vunpack.c.l.b16 %v404
  %v526 = vunpack.c.l.b16 %v405
  %v527 = vunpack.c.l.b16 %v406
  %v528 = vunpack.c.l.b16 %v407
  %v529 = vunpack.c.l.b16 %v408
  %v530 = vunpack.c.l.b16 %v409
  %v531 = vunpack.c.l.b16 %v410
  %v532 = vunpack.c.l.b16 %v411
  %v533 = vunpack.c.l.b16 %v412
  %v534 = vunpack.c.l.b16 %v413
  %v535 = vunpack.c.l.b16 %v414
  %v536 = vunpack.c.l.b16 %v415
  %v537 = vpack.c.b16 %v522, %v521
  %v538 = vpack.c.b16 %v524, %v523
  %v539 = vpack.c.b16 %v526, %v525
  %v540 = vpack.c.b16 %v528, %v527
  %v541 = vpack.c.b16 %v530, %v529
  %v542 = vpack.c.b16 %v532, %v531
  %v543 = vpack.c.b16 %v534, %v533
  %v544 = vpack.c.b16 %v536, %v535
  %553 = vmatpush.bf16.msra.mxu0 %v544
  %554 = vmatpush.bf16.msra.mxu0 %v543
  %555 = vmatpush.bf16.msra.mxu0 %v542
  %556 = vmatpush.bf16.msra.mxu0 %v541
  %557 = vmatpush.bf16.msra.mxu0 %v540
  %558 = vmatpush.bf16.msra.mxu0 %v539
  %559 = vmatpush.bf16.msra.mxu0 %v538
  %560 = vmatpush.bf16.msra.mxu0 %v537
  %561 = vmatmul.bf16.gmra.mxu0 %v398
  %v562 = vpop.f32.mrf.mxu0
  %v563 = vadd.f32 %v496, %v562
  %v564 = vpop.f32.mrf.mxu0
  %v565 = vadd.f32 %v498, %v564
  %566 = vmatmul.bf16.gmra.mxu0 %v399
  %v567 = vpop.f32.mrf.mxu0
  %v568 = vadd.f32 %v501, %v567
  %v569 = vpop.f32.mrf.mxu0
  %v570 = vadd.f32 %v503, %v569
  %571 = vdwg.mxu0
  %v572 = vld [vmem:[#allocation2 + $0x2] sm:$0xff]
  %v573 = vld [vmem:[#allocation2 + $0xa] sm:$0xff]
  %v574 = vld [vmem:[#allocation2 + $0x1a] sm:$0xff]
  %v575 = vld [vmem:[#allocation2 + $0x22] sm:$0xff]
  %v576 = vpack.c.bf16 %v573, %v572
  %v577 = vpack.c.bf16 %v575, %v574
  %v578 = vld [vmem:[%s4 + $0x80] sm:$0xf]
  %v579 = vld [vmem:[%s4 + $0x84] sm:$0xf]
  %v580 = vld [vmem:[%s4 + $0x88] sm:$0xf]
  %v581 = vld [vmem:[%s4 + $0x8c] sm:$0xf]
  %v582 = vld [vmem:[%s4 + $0x90] sm:$0xf]
  %v583 = vld [vmem:[%s4 + $0x94] sm:$0xf]
  %v584 = vld [vmem:[%s4 + $0x98] sm:$0xf]
  %v585 = vld [vmem:[%s4 + $0x9c] sm:$0xf]
  %v586 = vld [vmem:[%s4 + $0xa0] sm:$0xf]
  %v587 = vld [vmem:[%s4 + $0xa4] sm:$0xf]
  %v588 = vld [vmem:[%s4 + $0xa8] sm:$0xf]
  %v589 = vld [vmem:[%s4 + $0xac] sm:$0xf]
  %v590 = vld [vmem:[%s4 + $0xb0] sm:$0xf]
  %v591 = vld [vmem:[%s4 + $0xb4] sm:$0xf]
  %v592 = vld [vmem:[%s4 + $0xb8] sm:$0xf]
  %v593 = vld [vmem:[%s4 + $0xbc] sm:$0xf]
  %v610 = vunpack.c.l.b16 %v578
  %v611 = vunpack.c.l.b16 %v579
  %v612 = vunpack.c.l.b16 %v580
  %v613 = vunpack.c.l.b16 %v581
  %v614 = vunpack.c.l.b16 %v582
  %v615 = vunpack.c.l.b16 %v583
  %v616 = vunpack.c.l.b16 %v584
  %v617 = vunpack.c.l.b16 %v585
  %v618 = vunpack.c.l.b16 %v586
  %v619 = vunpack.c.l.b16 %v587
  %v620 = vunpack.c.l.b16 %v588
  %v621 = vunpack.c.l.b16 %v589
  %v622 = vunpack.c.l.b16 %v590
  %v623 = vunpack.c.l.b16 %v591
  %v624 = vunpack.c.l.b16 %v592
  %v625 = vunpack.c.l.b16 %v593
  %v626 = vpack.c.b16 %v611, %v610
  %v627 = vpack.c.b16 %v613, %v612
  %v628 = vpack.c.b16 %v615, %v614
  %v629 = vpack.c.b16 %v617, %v616
  %v630 = vpack.c.b16 %v619, %v618
  %v631 = vpack.c.b16 %v621, %v620
  %v632 = vpack.c.b16 %v623, %v622
  %v633 = vpack.c.b16 %v625, %v624
  %642 = vmatpush.bf16.msra.mxu0 %v633
  %643 = vmatpush.bf16.msra.mxu0 %v632
  %644 = vmatpush.bf16.msra.mxu0 %v631
  %645 = vmatpush.bf16.msra.mxu0 %v630
  %646 = vmatpush.bf16.msra.mxu0 %v629
  %647 = vmatpush.bf16.msra.mxu0 %v628
  %648 = vmatpush.bf16.msra.mxu0 %v627
  %649 = vmatpush.bf16.msra.mxu0 %v626
  %650 = vmatmul.bf16.gmra.mxu0 %v576
  %v651 = vpop.f32.mrf.mxu0
  %v652 = vadd.f32 0.0, %v651
  %v653 = vpop.f32.mrf.mxu0
  %v654 = vadd.f32 0.0, %v653
  %655 = vmatmul.bf16.gmra.mxu0 %v577
  %v656 = vpop.f32.mrf.mxu0
  %v657 = vadd.f32 0.0, %v656
  %v658 = vpop.f32.mrf.mxu0
  %v659 = vadd.f32 0.0, %v658
  %660 = vdwg.mxu0
  %v661 = vadd.f32 %v563, %v652
  %v662 = vadd.f32 %v565, %v654
  %v663 = vadd.f32 %v568, %v657
  %v664 = vadd.f32 %v570, %v659
  %v665 = vld [vmem:[%s5] sm:$0x1]
  %v666 = vld [vmem:[%s6] sm:$0x1]
  %v667 = vadd.f32 %v661, %v662
  %v668 = vadd.f32 %v667, %v663
  %v669 = vadd.f32 %v668, %v664
  %v670 = vrot.slane %v669, 4
  %v671 = vadd.f32 %v669, %v670
  %v672 = vrot.slane %v671, 2
  %v673 = vadd.f32 %v671, %v672
  %v674 = vrot.slane %v673, 1
  %v675 = vadd.f32 %v673, %v674
  %v676 = vmul.f32 %v661, %v661
  %v677 = vmul.f32 %v662, %v662
  %v678 = vmul.f32 %v663, %v663
  %v679 = vmul.f32 %v664, %v664
  %v680 = vadd.f32 %v676, %v677
  %v681 = vadd.f32 %v680, %v678
  %v682 = vadd.f32 %v681, %v679
  %v683 = vrot.slane %v682, 4
  %v684 = vadd.f32 %v682, %v683
  %v685 = vrot.slane %v684, 2
  %v686 = vadd.f32 %v684, %v685
  %v687 = vrot.slane %v686, 1
  %v688 = vadd.f32 %v686, %v687
  %v689 = vsel %vm333, %v675, %v688
  %690 = vrot.lane.b32.xlu0 %v689, 8
  %v691 = vpop.permute.xlu0 %690
  %v692 = vadd.f32 %v689, %v691
  %693 = vrot.lane.b32.xlu0 %v692, 16
  %v694 = vpop.permute.xlu0 %693
  %v695 = vadd.f32 %v692, %v694
  %696 = vrot.lane.b32.xlu0 %v695, 32
  %v697 = vpop.permute.xlu0 %696
  %v698 = vadd.f32 %v695, %v697
  %699 = vrot.lane.b32.xlu0 %v698, 64
  %v700 = vpop.permute.xlu0 %699
  %v701 = vadd.f32 %v698, %v700
  %v702 = vmul.f32 %v701, 0.001953125
  %v703 = vmul.f32 %v702, %v702
  %v705 = vrot.slane %v703, 7
  %v707 = vsub.f32 %v702, %v705
  %v708 = vadd.f32 %v707, 1e-05
  %v709 = vrsqrt.pop %v708
  %v710 = vmul.f32 %v709, %v708
  %v711 = vmul.f32 %v710, %v709
  %v712 = vmul.f32 0.5, %v711
  %v713 = vsub.f32 1.5, %v712
  %v714 = vmul.f32 %v709, %v713
  %vm715 = vweird.f32 %v708
  %vm716 = vweird.f32 %v709
  %vm717 = vmor %vm715, %vm716
  %v718 = vsel %vm717, %v709, %v714
  %720 = vst [vmem:[#allocation1] sm:$0xff] %v718
  %s721 = scalar_lea.vmem [#allocation1], 1
  %v722 = vld [vmem:[%s721] ss:$9 sm:$0xff]
  %v724 = vmul.f32 %v665, %v722
  %v725 = vmul.f32 %v702, %v724
  %v726 = vsub.f32 %v666, %v725
  %v728 = vperm.slane %v724, 0
  %v730 = vmul.f32 %v661, %v728
  %v731 = vmul.f32 %v662, %v728
  %v732 = vmul.f32 %v663, %v728
  %v733 = vmul.f32 %v664, %v728
  %v735 = vperm.slane %v726, 0
  %v737 = vadd.f32 %v730, %v735
  %v738 = vadd.f32 %v731, %v735
  %v739 = vadd.f32 %v732, %v735
  %v740 = vadd.f32 %v733, %v735
  %v741 = vadd.f32 %v737, %v30
  %v742 = vadd.f32 %v738, %v31
  %v743 = vadd.f32 %v739, %v32
  %v744 = vadd.f32 %v740, %v33
  %v745 = vmax.f32 %v741, 0.0
  %v746 = vmax.f32 %v742, 0.0
  %v747 = vmax.f32 %v743, 0.0
  %v748 = vmax.f32 %v744, 0.0
  %749 = vst [vmem:[%s7] sm:$0xff] %v745
  %750 = vst [vmem:[%s7 + $0x8] sm:$0xff] %v746
  %751 = vst [vmem:[%s7 + $0x10] sm:$0xff] %v747
  %752 = vst [vmem:[%s7 + $0x18] sm:$0xff] %v748
  // Predicated region
  $region30: #{_basic_block_pallas.1} parent=0 // pred_check
    _
  $region31: #{_basic_block_pallas.1} parent=0 // pred_check_branch
    %754 = sbr.rel (0) target = $region33
  $region32: #{_basic_block_pallas.1} parent=0 // pred_region
    _
  $region33: #{_basic_block_pallas.1} parent=0 // pred_fallthru
    _
  // Predicated region
  $region34: #{_basic_block_pallas.1} parent=0 // pred_check
    _
  $region35: #{_basic_block_pallas.1} parent=0 // pred_check_branch
    %756 = sbr.rel (0) target = $region37
  $region36: #{_basic_block_pallas.1} parent=0 // pred_region
    _
  $region37: #{_basic_block_pallas.1} parent=0 // pred_fallthru
    _

</llo_original>
